<compile_context>
chip_gen: v5e
topology: v5e:2x2
jax: 0.10.0
libtpu: 0.0.40
codegen_flags: <defaults>
</compile_context>

<pallas_src>
import jax
import jax.numpy as jnp
from jax import lax
from jax.experimental import pallas as pl
from jax.experimental.pallas import tpu as pltpu

# ----- small synthetic "config" (bert-base-like, shrunk) -----
VOCAB_SIZE = 1000
HIDDEN = 128
MAX_POS = 64
EPS = 1e-12

BATCH = 2
SEQ = 8


def _round_up(x, m):
    return (x + m - 1) // m * m


def embedding_forward(input_ids, tok_table, pos_table, gamma, beta,
                      *, tile_s=256, eps=EPS):
    B, S = input_ids.shape
    V, H = tok_table.shape
    P, _ = pos_table.shape
    assert S <= P, "sequence longer than position table"

    tile_s = min(tile_s, S)
    assert S % tile_s == 0, "S must be a multiple of the row-tile size"
    assert tile_s % 8 == 0 or tile_s == B * S, "tile must be sublane aligned"

    N = B * S                      # total rows, flattened over (batch, seq)
    n_tiles = N // tile_s
    n_pos_blocks = S // tile_s     # pos block index repeats every batch element

    V_pad = _round_up(V, 128)      # lane-aligned vocab for iota / MXU contraction

    # Wrapper-side prep (vectorized XLA ops, done once):
    ids_col = jnp.clip(input_ids.reshape(N, 1).astype(jnp.int32), 0, V - 1)
    tok_pad = jnp.zeros((V_pad, H), tok_table.dtype).at[:V, :].set(tok_table)
    pos_s = pos_table[:S, :]                                      # (S, H)
    gb = jnp.stack([gamma.reshape(H), beta.reshape(H)], axis=0)   # (2, H)

    inv_h = 1.0 / H        # Python floats -> kernel literals (no captured consts)
    eps_f = float(eps)

    def kernel(ids_ref, tok_ref, pos_ref, gb_ref, out_ref):
        # --- exact MXU one-hot gather from the VMEM-resident token table ---
        ids_tile = ids_ref[...]                                   # (tile_s, 1) i32
        onehot = (ids_tile == lax.broadcasted_iota(
            jnp.int32, (tile_s, V_pad), 1)).astype(jnp.float32)   # (tile_s, V_pad)
        tok = jnp.dot(onehot, tok_ref[...],
                      preferred_element_type=jnp.float32)         # (tile_s, H)

        x = tok + pos_ref[...]                                    # (tile_s, H)

        # --- LayerNorm (centered variance for nn.LayerNorm parity) ---
        mean = jnp.sum(x, axis=-1, keepdims=True) * inv_h
        xc = x - mean
        var = jnp.sum(xc * xc, axis=-1, keepdims=True) * inv_h
        y = xc * lax.rsqrt(var + eps_f)

        out_ref[...] = y * gb_ref[0:1, :] + gb_ref[1:2, :]
        # Dropout: identity in eval mode.

    out_flat = pl.pallas_call(
        kernel,
        out_shape=jax.ShapeDtypeStruct((N, H), jnp.float32),
        grid=(n_tiles,),
        in_specs=[
            pl.BlockSpec((tile_s, 1), lambda i: (i, 0)),               # ids column
            pl.BlockSpec((V_pad, H), lambda i: (0, 0)),                # token table (resident)
            pl.BlockSpec((tile_s, H), lambda i: (i % n_pos_blocks, 0)),  # position rows
            pl.BlockSpec((2, H), lambda i: (0, 0)),                    # [gamma; beta] (resident)
        ],
        out_specs=pl.BlockSpec((tile_s, H), lambda i: (i, 0)),
        compiler_params=pltpu.CompilerParams(
            dimension_semantics=("parallel",),
            vmem_limit_bytes=32 * 1024 * 1024,   # safe on v5e/v6e/v7x for this config
        ),
    )(ids_col, tok_pad, pos_s, gb)

    return out_flat.reshape(B, S, H)


def reference_forward(input_ids, tok_table, pos_table, gamma, beta, eps=EPS):
    tok = jnp.take(tok_table, input_ids, axis=0)             # (B,S,H)
    pos = pos_table[: input_ids.shape[1]][None, :, :]        # (1,S,H)
    x = tok + pos
    mean = jnp.mean(x, axis=-1, keepdims=True)
    var = jnp.mean((x - mean) ** 2, axis=-1, keepdims=True)
    return (x - mean) * lax.rsqrt(var + eps) * gamma + beta


if __name__ == "__main__":
    key = jax.random.PRNGKey(0)
    k_tok, k_pos, k_ids = jax.random.split(key, 3)

    # Deterministic parameter init (synthetic; matches module shapes).
    tok_table = 0.02 * jax.random.normal(k_tok, (VOCAB_SIZE, HIDDEN), jnp.float32)
    pos_table = 0.02 * jax.random.normal(k_pos, (MAX_POS, HIDDEN), jnp.float32)
    gamma = jnp.ones((HIDDEN,), jnp.float32)   # LayerNorm weight
    beta = jnp.zeros((HIDDEN,), jnp.float32)   # LayerNorm bias

    input_ids = jax.random.randint(k_ids, (BATCH, SEQ), 0, VOCAB_SIZE, jnp.int32)

    out = embedding_forward(input_ids, tok_table, pos_table, gamma, beta)
    out = jax.block_until_ready(out)

    ref = reference_forward(input_ids, tok_table, pos_table, gamma, beta)
    assert out.shape == (BATCH, SEQ, HIDDEN)
    max_err = float(jnp.max(jnp.abs(out - ref)))
    assert jnp.allclose(out, ref, atol=1e-4, rtol=1e-4), max_err

    print("KERNEL_OK")
</pallas_src>

<mosaic_0001>
module attributes {stable_mosaic.version = 11 : i64} {
  func.func @kernel(%arg0: i32, %arg1: memref<8x1xi32, #tpu.memory_space<vmem>>, %arg2: memref<1024x128xf32, #tpu.memory_space<vmem>>, %arg3: memref<8x128xf32, #tpu.memory_space<vmem>>, %arg4: memref<2x128xf32, #tpu.memory_space<vmem>>, %arg5: memref<8x128xf32, #tpu.memory_space<vmem>>) attributes {dimension_semantics = [#tpu.dimension_semantics<parallel>], iteration_bounds = array<i64: 2>, scalar_prefetch = 0 : i64, scratch_operands = 0 : i64, tpu.core_type = #tpu.core_type<tc>, window_params = [{transform_indices = @transform_0, window_bounds = array<i64: 8, 1>}, {pipeline_mode = #tpu.pipeline_mode<synchronous>, transform_indices = @transform_1, window_bounds = array<i64: 1024, 128>}, {transform_indices = @transform_2, window_bounds = array<i64: 8, 128>}, {pipeline_mode = #tpu.pipeline_mode<synchronous>, transform_indices = @transform_3, window_bounds = array<i64: 2, 128>}, {transform_indices = @transform_4, window_bounds = array<i64: 8, 128>}]} {
    %c0 = arith.constant 0 : index
    %c0_0 = arith.constant 0 : index
    %0 = vector.load %arg1[%c0, %c0_0] : memref<8x1xi32, #tpu.memory_space<vmem>>, vector<8x1xi32>
    %1 = tpu.iota {dimensions = array<i32: 1>} : vector<8x1024xi32>
    %2 = vector.broadcast %0 : vector<8x1xi32> to vector<8x1024xi32>
    %3 = arith.cmpi eq, %2, %1 : vector<8x1024xi32>
    %4 = arith.extui %3 : vector<8x1024xi1> to vector<8x1024xi32>
    %5 = arith.sitofp %4 : vector<8x1024xi32> to vector<8x1024xf32>
    %c0_1 = arith.constant 0 : index
    %c0_2 = arith.constant 0 : index
    %6 = vector.load %arg2[%c0_1, %c0_2] : memref<1024x128xf32, #tpu.memory_space<vmem>>, vector<1024x128xf32>
    %cst = arith.constant dense<0.000000e+00> : vector<8x128xf32>
    %7 = tpu.matmul %5, %6, %cst {dimension_numbers = #tpu.dot_dimension_numbers<[1], [0], [0], [1], [0, 0, 1, 1], [], []>} : vector<8x1024xf32>, vector<1024x128xf32>, vector<8x128xf32> -> vector<8x128xf32>
    %c0_3 = arith.constant 0 : index
    %c0_4 = arith.constant 0 : index
    %8 = vector.load %arg3[%c0_3, %c0_4] : memref<8x128xf32, #tpu.memory_space<vmem>>, vector<8x128xf32>
    %9 = arith.addf %7, %8 : vector<8x128xf32>
    %cst_5 = arith.constant dense<0.000000e+00> : vector<8xf32>
    %10 = vector.multi_reduction <add>, %9, %cst_5 [1] : vector<8x128xf32> to vector<8xf32>
    %11 = vector.shape_cast %10 : vector<8xf32> to vector<8x1xf32>
    %cst_6 = arith.constant 7.812500e-03 : f32
    %12 = vector.broadcast %cst_6 : f32 to vector<8x1xf32>
    %13 = arith.mulf %11, %12 : vector<8x1xf32>
    %14 = vector.broadcast %13 : vector<8x1xf32> to vector<8x128xf32>
    %15 = arith.subf %9, %14 : vector<8x128xf32>
    %16 = arith.mulf %15, %15 : vector<8x128xf32>
    %cst_7 = arith.constant dense<0.000000e+00> : vector<8xf32>
    %17 = vector.multi_reduction <add>, %16, %cst_7 [1] : vector<8x128xf32> to vector<8xf32>
    %18 = vector.shape_cast %17 : vector<8xf32> to vector<8x1xf32>
    %cst_8 = arith.constant 7.812500e-03 : f32
    %19 = vector.broadcast %cst_8 : f32 to vector<8x1xf32>
    %20 = arith.mulf %18, %19 : vector<8x1xf32>
    %cst_9 = arith.constant 9.99999996E-13 : f32
    %21 = vector.broadcast %cst_9 : f32 to vector<8x1xf32>
    %22 = arith.addf %20, %21 : vector<8x1xf32>
    %23 = math.rsqrt %22 : vector<8x1xf32>
    %24 = vector.broadcast %23 : vector<8x1xf32> to vector<8x128xf32>
    %25 = arith.mulf %15, %24 : vector<8x128xf32>
    %c0_10 = arith.constant 0 : index
    %c0_11 = arith.constant 0 : index
    %26 = vector.load %arg4[%c0_10, %c0_11] : memref<2x128xf32, #tpu.memory_space<vmem>>, vector<1x128xf32>
    %27 = vector.broadcast %26 : vector<1x128xf32> to vector<8x128xf32>
    %28 = arith.mulf %25, %27 : vector<8x128xf32>
    %c1 = arith.constant 1 : index
    %c0_12 = arith.constant 0 : index
    %29 = vector.load %arg4[%c1, %c0_12] : memref<2x128xf32, #tpu.memory_space<vmem>>, vector<1x128xf32>
    %30 = vector.broadcast %29 : vector<1x128xf32> to vector<8x128xf32>
    %31 = arith.addf %28, %30 : vector<8x128xf32>
    %c0_13 = arith.constant 0 : index
    %c0_14 = arith.constant 0 : index
    %32 = vector.load %arg5[%c0_13, %c0_14] : memref<8x128xf32, #tpu.memory_space<vmem>>, vector<8x128xf32>
    tpu.vector_store %arg5[%c0_13, %c0_14], %31 {strides = array<i32>} : memref<8x128xf32, #tpu.memory_space<vmem>>, vector<8x128xf32>,
    return
  }
  func.func @transform_0(%arg0: i32) -> (i32, i32) {
    %c0_i32 = arith.constant 0 : i32
    %c0_i32_0 = arith.constant 0 : i32
    return %arg0, %c0_i32 : i32, i32
  }
  func.func @transform_1(%arg0: i32) -> (i32, i32) {
    %c0_i32 = arith.constant 0 : i32
    %c0_i32_0 = arith.constant 0 : i32
    %c0_i32_1 = arith.constant 0 : i32
    return %c0_i32, %c0_i32_0 : i32, i32
  }
  func.func @transform_2(%arg0: i32) -> (i32, i32) {
    %c1_i32 = arith.constant 1 : i32
    %c0_i32 = arith.constant 0 : i32
    %0 = arith.cmpi eq, %c1_i32, %c0_i32 : i32
    %c1_i32_0 = arith.constant 1 : i32
    %1 = arith.select %0, %c1_i32_0, %c1_i32 : i32
    %2 = arith.remsi %arg0, %1 : i32
    %c0_i32_1 = arith.constant 0 : i32
    %3 = arith.cmpi ne, %2, %c0_i32_1 : i32
    %c0_i32_2 = arith.constant 0 : i32
    %4 = arith.cmpi slt, %2, %c0_i32_2 : i32
    %c0_i32_3 = arith.constant 0 : i32
    %5 = arith.cmpi slt, %1, %c0_i32_3 : i32
    %6 = arith.xori %4, %5 : i1
    %7 = arith.andi %6, %3 : i1
    %8 = arith.addi %2, %1 : i32
    %9 = arith.select %7, %8, %2 : i32
    %c0_i32_4 = arith.constant 0 : i32
    %c0_i32_5 = arith.constant 0 : i32
    return %9, %c0_i32_4 : i32, i32
  }
  func.func @transform_3(%arg0: i32) -> (i32, i32) {
    %c0_i32 = arith.constant 0 : i32
    %c0_i32_0 = arith.constant 0 : i32
    %c0_i32_1 = arith.constant 0 : i32
    return %c0_i32, %c0_i32_0 : i32, i32
  }
  func.func @transform_4(%arg0: i32) -> (i32, i32) {
    %c0_i32 = arith.constant 0 : i32
    %c0_i32_0 = arith.constant 0 : i32
    return %arg0, %c0_i32 : i32, i32
  }
}

</mosaic_0001>

<llo_original>
// kernel: tpu_custom_call.1
$region0: #{tpu_custom_call.1}
  #allocation0 [shape = 'u32[]', space=smem, size = 0x4, offset = 0x4, fixed_abs, tag = 'smem constant byte address 0x4 - core index']
  #allocation1 [shape = 'u32[72,128]{1,0:T(1,128)}', space=vmem, size = 0x9000, scoped, tag = 'internal scratch']
  %s0 = inlined_call_operand.vmem [shape: s32[16,1], index: 0, kind: input, shape index: {}]
  %s1 = inlined_call_operand.hbm [shape: f32[1024,128], index: 1, kind: input, shape index: {}]
  %s2 = inlined_call_operand.vmem [shape: f32[8,128], index: 2, kind: input, shape index: {}]
  %s3 = inlined_call_operand.vmem [shape: f32[2,128], index: 3, kind: input, shape index: {}]
  %s4 = inlined_call_operand.hbm [shape: f32[16,128], index: 4, kind: output, shape index: {}]
  %s5 = sld [smem:[#allocation0]]
  $region53: #{tpu_custom_call.1} parent=0
    _
  %s7 = ssub.s32 1, %s5
  %s8 = scalar_select 0, %s7, %s5
  $region1: #{tpu_custom_call.1} parent=0
    #allocation2 [shape = 'u8[524288]{0}', space=vmem, size = 0x80000, scoped, tag = 'input window, operand 1, single buffered']
    #allocation3 [shape = 's32[2]{0}', space=sflag, size = 0x8, scoped, tag = 'scoped memory for tpu_custom_call.1']
    #allocation4 [shape = 's32[2]{0}', space=sflag, size = 0x8, scoped, tag = 'scoped memory for tpu_custom_call.1']
    #allocation5 [shape = 'u8[8192]{0}', space=vmem, size = 0x2000, scoped, tag = 'output window, operand 0']
    %9 = vsyncpa [#allocation3], 0
    %10 = vsyncpa [#allocation4], 0
    %s11 = scalar_lea.sflag [#allocation4], 1
    %12 = vsyncpa %s11, 0
    loop: start=0, step=1, limit=4
    $region2: #{tpu_custom_call.1} parent=1 // loop_pre_header
      _
    $region3: #{tpu_custom_call.1} parent=1 // loop_header
      %s14 = sphi 0, %s18
      %p15 = scmp.ge.s32.totalorder %s14, 4
      %s24 = sphi 0, %s26
      %s27 = sphi 0, %s24
      %s28 = sphi 0, %s27
      %s44 = sphi 0, %s28
      %s48 = sphi 0, %s48
      %s50 = sphi 0, %s48
      %s51 = sphi 0, %s50
      %s65 = sphi 0, %s51
      %s69 = sphi 0, %s69
      %s71 = sphi 0, %s69
      %s72 = sphi 0, %s71
      %s86 = sphi 0, %s72
      %s90 = sphi 0, %s90
      %s92 = sphi 0, %s90
      %s93 = sphi 0, %s92
      %s107 = sphi 0, %s93
      %s113 = sphi 0, %s115
      %s116 = sphi 0, %s113
      %s117 = sphi 0, %s116
      %s133 = sphi 0, %s117
    $region4: #{tpu_custom_call.1} parent=1 // loop_header_branch
      %17 = sbr.rel (%p15) target = $region8
    $region5: #{tpu_custom_call.1} parent=1 // loop_body
      %s19 = ssub.s32 %s14, 1
      %s20 = ssub.s32 %s14, 2
      %s21 = sadd.s32 %s14, 1
      %s22 = ssub.s32 %s14, %s21
      %p23 = scmp.eq.s32.totalorder %s22, 0
      %s25 = sadd.s32 %s24, 1
      %s26 = scalar_select %p23, %s24, %s25
      %p29 = pneg %p23
      %p30 = scmp.eq.s32.totalorder %s14, 1
      %p31 = por %p29, %p30
      %p32 = scmp.ne.s32.totalorder %s24, %s27
      %p33 = scmp.eq.s32.totalorder %s14, 0
      %p34 = por %p32, %p33
      %p35 = scmp.ne.s32.totalorder %s24, %s27
      %p36 = scmp.eq.s32.totalorder %s19, 1
      %p37 = por %p35, %p36
      %p38 = scmp.ne.s32.totalorder %s27, %s28
      %p39 = scmp.eq.s32.totalorder %s19, 0
      %p40 = por %p38, %p39
      %p41 = scmp.ne.s32.totalorder %s27, %s28
      %p42 = scmp.eq.s32.totalorder %s20, 1
      %p43 = por %p41, %p42
      %p45 = scmp.ne.s32.totalorder %s28, %s44
      %p46 = scmp.eq.s32.totalorder %s20, 0
      %p47 = por %p45, %p46
      %s49 = sadd.s32 %s48, 1
      %p52 = scmp.eq.s32.totalorder %s14, 1
      %p53 = scmp.ne.s32.totalorder %s48, %s50
      %p54 = scmp.eq.s32.totalorder %s14, 0
      %p55 = por %p53, %p54
      %p56 = scmp.ne.s32.totalorder %s48, %s50
      %p57 = scmp.eq.s32.totalorder %s19, 1
      %p58 = por %p56, %p57
      %p59 = scmp.ne.s32.totalorder %s50, %s51
      %p60 = scmp.eq.s32.totalorder %s19, 0
      %p61 = por %p59, %p60
      %p62 = scmp.ne.s32.totalorder %s50, %s51
      %p63 = scmp.eq.s32.totalorder %s20, 1
      %p64 = por %p62, %p63
      %p66 = scmp.ne.s32.totalorder %s51, %s65
      %p67 = scmp.eq.s32.totalorder %s20, 0
      %p68 = por %p66, %p67
      %s70 = sadd.s32 %s69, 1
      %p73 = scmp.eq.s32.totalorder %s14, 1
      %p74 = scmp.ne.s32.totalorder %s69, %s71
      %p75 = scmp.eq.s32.totalorder %s14, 0
      %p76 = por %p74, %p75
      %p77 = scmp.ne.s32.totalorder %s69, %s71
      %p78 = scmp.eq.s32.totalorder %s19, 1
      %p79 = por %p77, %p78
      %p80 = scmp.ne.s32.totalorder %s71, %s72
      %p81 = scmp.eq.s32.totalorder %s19, 0
      %p82 = por %p80, %p81
      %p83 = scmp.ne.s32.totalorder %s71, %s72
      %p84 = scmp.eq.s32.totalorder %s20, 1
      %p85 = por %p83, %p84
      %p87 = scmp.ne.s32.totalorder %s72, %s86
      %p88 = scmp.eq.s32.totalorder %s20, 0
      %p89 = por %p87, %p88
      %s91 = sadd.s32 %s90, 1
      %p94 = scmp.eq.s32.totalorder %s14, 1
      %p95 = scmp.ne.s32.totalorder %s90, %s92
      %p96 = scmp.eq.s32.totalorder %s14, 0
      %p97 = por %p95, %p96
      %p98 = scmp.ne.s32.totalorder %s90, %s92
      %p99 = scmp.eq.s32.totalorder %s19, 1
      %p100 = por %p98, %p99
      %p101 = scmp.ne.s32.totalorder %s92, %s93
      %p102 = scmp.eq.s32.totalorder %s19, 0
      %p103 = por %p101, %p102
      %p104 = scmp.ne.s32.totalorder %s92, %s93
      %p105 = scmp.eq.s32.totalorder %s20, 1
      %p106 = por %p104, %p105
      %p108 = scmp.ne.s32.totalorder %s93, %s107
      %p109 = scmp.eq.s32.totalorder %s20, 0
      %p110 = por %p108, %p109
      %s111 = ssub.s32 %s14, %s21
      %p112 = scmp.eq.s32.totalorder %s111, 0
      %s114 = sadd.s32 %s113, 1
      %s115 = scalar_select %p112, %s113, %s114
      %p118 = pneg %p112
      %p119 = scmp.eq.s32.totalorder %s14, 1
      %p120 = por %p118, %p119
      %p121 = scmp.ne.s32.totalorder %s113, %s116
      %p122 = scmp.eq.s32.totalorder %s14, 0
      %p123 = por %p121, %p122
      %p124 = scmp.ne.s32.totalorder %s113, %s116
      %p125 = scmp.eq.s32.totalorder %s19, 1
      %p126 = por %p124, %p125
      %p127 = scmp.ne.s32.totalorder %s116, %s117
      %p128 = scmp.eq.s32.totalorder %s19, 0
      %p129 = por %p127, %p128
      %p130 = scmp.ne.s32.totalorder %s116, %s117
      %p131 = scmp.eq.s32.totalorder %s20, 1
      %p132 = por %p130, %p131
      %p134 = scmp.ne.s32.totalorder %s117, %s133
      %p135 = scmp.eq.s32.totalorder %s20, 0
      %p136 = por %p134, %p135
      %p137 = scmp.le.s32.totalorder 1, %s14
      %p138 = scmp.lt.s32.totalorder %s14, 3
      %p139 = pnand %p137, %p138
      %p140 = pneg %p139
      // Predicated region
      $region9: #{tpu_custom_call.1} parent=5 // pred_check
        _
      $region10: #{tpu_custom_call.1} parent=5 // pred_check_branch
        %142 = sbr.rel (%p139) target = $region12
      $region11: #{tpu_custom_call.1} parent=5 // pred_region
        %s143 = ssub.s32 %s14, 1
        // Predicated region
        $region13: #{tpu_custom_call.1} parent=11 // pred_check
          %p144 = pneg %p61
        $region14: #{tpu_custom_call.1} parent=11 // pred_check_branch
          %146 = sbr.rel (%p144) target = $region16
        $region15: #{tpu_custom_call.1} parent=11 // pred_region
          %148 = vsyncadd [#allocation3], 0
          %s149 = sshll.u32 %s1, 4
          %s150 = int_to_ptr.hbm [resolvable:$true] %s149
          %s151 = sshll.u32 [#allocation2], 4
          %s152 = int_to_ptr.vmem [resolvable:$true] %s151
          %157 = dma.hbm_to_vmem [thread:$0]  %s150, 16384, %s152, [#allocation3], 128, 128, 8
        $region16: #{tpu_custom_call.1} parent=11 // pred_fallthru
          _
        // Predicated region
        $region17: #{tpu_custom_call.1} parent=11 // pred_check
          %p158 = pneg %p82
        $region18: #{tpu_custom_call.1} parent=11 // pred_check_branch
          %160 = sbr.rel (%p158) target = $region20
        $region19: #{tpu_custom_call.1} parent=11 // pred_region
          _
        $region20: #{tpu_custom_call.1} parent=11 // pred_fallthru
          _
        // Predicated region
        $region21: #{tpu_custom_call.1} parent=11 // pred_check
          %p161 = pneg %p103
        $region22: #{tpu_custom_call.1} parent=11 // pred_check_branch
          %163 = sbr.rel (%p161) target = $region24
        $region23: #{tpu_custom_call.1} parent=11 // pred_region
          _
        $region24: #{tpu_custom_call.1} parent=11 // pred_fallthru
          _
      $region12: #{tpu_custom_call.1} parent=5 // pred_fallthru
        _
      %p164 = scmp.lt.s32.totalorder %s14, 2
      // Predicated region
      $region25: #{tpu_custom_call.1} parent=5 // pred_check
        %p165 = pneg %p164
      $region26: #{tpu_custom_call.1} parent=5 // pred_check_branch
        %167 = sbr.rel (%p165) target = $region28
      $region27: #{tpu_custom_call.1} parent=5 // pred_region
        // Predicated region
        $region29: #{tpu_custom_call.1} parent=27 // pred_check
          %p168 = pneg %p34
        $region30: #{tpu_custom_call.1} parent=27 // pred_check_branch
          %170 = sbr.rel (%p168) target = $region32
        $region31: #{tpu_custom_call.1} parent=27 // pred_region
          %p171 = scmp.lt.s32.totalorder %s14, 1
          %s172 = scalar_select %p171, %s14, 1
          %s173 = smul.addr %s172, 8
          %s174 = scalar_lea.vmem %s0, %s173
        $region32: #{tpu_custom_call.1} parent=27 // pred_fallthru
          _
      $region28: #{tpu_custom_call.1} parent=5 // pred_fallthru
        _
      %p175 = scmp.le.s32.totalorder 1, %s14
      %p176 = scmp.lt.s32.totalorder %s14, 3
      %p177 = pnand %p175, %p176
      %p178 = pneg %p177
      // Predicated region
      $region33: #{tpu_custom_call.1} parent=5 // pred_check
        _
      $region34: #{tpu_custom_call.1} parent=5 // pred_check_branch
        %180 = sbr.rel (%p177) target = $region36
      $region35: #{tpu_custom_call.1} parent=5 // pred_region
        %s181 = ssub.s32 %s14, 1
        // Predicated region
        $region37: #{tpu_custom_call.1} parent=35 // pred_check
          %p182 = pneg %p61
        $region38: #{tpu_custom_call.1} parent=35 // pred_check_branch
          %184 = sbr.rel (%p182) target = $region40
        $region39: #{tpu_custom_call.1} parent=35 // pred_region
          %186 = dma.done [#allocation3], 16384
        $region40: #{tpu_custom_call.1} parent=35 // pred_fallthru
          _
        %p187 = scmp.lt.s32.totalorder %s19, 1
        %s188 = scalar_select %p187, %s19, 1
        %s189 = smul.addr %s188, 8
        %s190 = scalar_lea.vmem %s0, %s189
        %p191 = pneg %p40
        %p192 = pneg %p37
        %p193 = pneg %p61
        %p194 = pneg %p58
        %p195 = pneg %p82
        %p196 = pneg %p79
        %p197 = pneg %p103
        %p198 = pneg %p100
        %p199 = pneg %p129
        %p200 = pneg %p126
        %s201 = sand.u32 %s116, 1
        %s202 = scalar_lea.sflag [#allocation4], %s201
        %s203 = sand.u32 %s116, 1
        %s204 = smul.addr %s203, 8
        %s205 = scalar_lea.vmem [#allocation5], %s204
        %p206 = scmp.lt.s32.totalorder %s19, 1
        %s207 = scalar_select %p206, %s19, 1
        %s208 = smul.addr %s207, 8
        %s209 = scalar_lea.vmem %s0, %s208
        %v210 = vld [vmem:[%s209] sm:$0xff]
        %v211 = vlaneseq
        %v212 = vand.u32 %v211, 127
        %v213 = vadd.s32 %v212, 128
        %v214 = vadd.s32 %v212, 256
        %v215 = vadd.s32 %v212, 384
        %v216 = vadd.s32 %v212, 512
        %v217 = vadd.s32 %v212, 640
        %v218 = vadd.s32 %v212, 768
        %v219 = vadd.s32 %v212, 896
        %220 = vset.pattern.permute.xlu0 0
        %221 = vperm.xlu0 %220, %v210
        %v222 = vpop.permute.xlu0 %221
        %vm223 = vcmp.eq.s32.totalorder %v222, %v212
        %vm224 = vcmp.eq.s32.totalorder %v222, %v213
        %vm225 = vcmp.eq.s32.totalorder %v222, %v214
        %vm226 = vcmp.eq.s32.totalorder %v222, %v215
        %vm227 = vcmp.eq.s32.totalorder %v222, %v216
        %vm228 = vcmp.eq.s32.totalorder %v222, %v217
        %vm229 = vcmp.eq.s32.totalorder %v222, %v218
        %vm230 = vcmp.eq.s32.totalorder %v222, %v219
        %v231 = vsel %vm223, 1, 0
        %v232 = vsel %vm224, 1, 0
        %v233 = vsel %vm225, 1, 0
        %v234 = vsel %vm226, 1, 0
        %v235 = vsel %vm227, 1, 0
        %v236 = vsel %vm228, 1, 0
        %v237 = vsel %vm229, 1, 0
        %v238 = vsel %vm230, 1, 0
        %v239 = vcvt.s32.f32 %v231
        %v240 = vcvt.s32.f32 %v232
        %v241 = vcvt.s32.f32 %v233
        %v242 = vcvt.s32.f32 %v234
        %v243 = vcvt.s32.f32 %v235
        %v244 = vcvt.s32.f32 %v236
        %v245 = vcvt.s32.f32 %v237
        %v246 = vcvt.s32.f32 %v238
        %v247 = vld [vmem:[#allocation2] sm:$0xff]
        %v248 = vld [vmem:[#allocation2 + $0x8] sm:$0xff]
        %v249 = vld [vmem:[#allocation2 + $0x10] sm:$0xff]
        %v250 = vld [vmem:[#allocation2 + $0x18] sm:$0xff]
        %v251 = vld [vmem:[#allocation2 + $0x20] sm:$0xff]
        %v252 = vld [vmem:[#allocation2 + $0x28] sm:$0xff]
        %v253 = vld [vmem:[#allocation2 + $0x30] sm:$0xff]
        %v254 = vld [vmem:[#allocation2 + $0x38] sm:$0xff]
        %v255 = vld [vmem:[#allocation2 + $0x40] sm:$0xff]
        %v256 = vld [vmem:[#allocation2 + $0x48] sm:$0xff]
        %v257 = vld [vmem:[#allocation2 + $0x50] sm:$0xff]
        %v258 = vld [vmem:[#allocation2 + $0x58] sm:$0xff]
        %v259 = vld [vmem:[#allocation2 + $0x60] sm:$0xff]
        %v260 = vld [vmem:[#allocation2 + $0x68] sm:$0xff]
        %v261 = vld [vmem:[#allocation2 + $0x70] sm:$0xff]
        %v262 = vld [vmem:[#allocation2 + $0x78] sm:$0xff]
        %v263 = vld [vmem:[#allocation2 + $0x80] sm:$0xff]
        %v264 = vld [vmem:[#allocation2 + $0x88] sm:$0xff]
        %v265 = vld [vmem:[#allocation2 + $0x90] sm:$0xff]
        %v266 = vld [vmem:[#allocation2 + $0x98] sm:$0xff]
        %v267 = vld [vmem:[#allocation2 + $0xa0] sm:$0xff]
        %v268 = vld [vmem:[#allocation2 + $0xa8] sm:$0xff]
        %v269 = vld [vmem:[#allocation2 + $0xb0] sm:$0xff]
        %v270 = vld [vmem:[#allocation2 + $0xb8] sm:$0xff]
        %v271 = vld [vmem:[#allocation2 + $0xc0] sm:$0xff]
        %v272 = vld [vmem:[#allocation2 + $0xc8] sm:$0xff]
        %v273 = vld [vmem:[#allocation2 + $0xd0] sm:$0xff]
        %v274 = vld [vmem:[#allocation2 + $0xd8] sm:$0xff]
        %v275 = vld [vmem:[#allocation2 + $0xe0] sm:$0xff]
        %v276 = vld [vmem:[#allocation2 + $0xe8] sm:$0xff]
        %v277 = vld [vmem:[#allocation2 + $0xf0] sm:$0xff]
        %v278 = vld [vmem:[#allocation2 + $0xf8] sm:$0xff]
        %v279 = vld [vmem:[#allocation2 + $0x100] sm:$0xff]
        %v280 = vld [vmem:[#allocation2 + $0x108] sm:$0xff]
        %v281 = vld [vmem:[#allocation2 + $0x110] sm:$0xff]
        %v282 = vld [vmem:[#allocation2 + $0x118] sm:$0xff]
        %v283 = vld [vmem:[#allocation2 + $0x120] sm:$0xff]
        %v284 = vld [vmem:[#allocation2 + $0x128] sm:$0xff]
        %v285 = vld [vmem:[#allocation2 + $0x130] sm:$0xff]
        %v286 = vld [vmem:[#allocation2 + $0x138] sm:$0xff]
        %v287 = vld [vmem:[#allocation2 + $0x140] sm:$0xff]
        %v288 = vld [vmem:[#allocation2 + $0x148] sm:$0xff]
        %v289 = vld [vmem:[#allocation2 + $0x150] sm:$0xff]
        %v290 = vld [vmem:[#allocation2 + $0x158] sm:$0xff]
        %v291 = vld [vmem:[#allocation2 + $0x160] sm:$0xff]
        %v292 = vld [vmem:[#allocation2 + $0x168] sm:$0xff]
        %v293 = vld [vmem:[#allocation2 + $0x170] sm:$0xff]
        %v294 = vld [vmem:[#allocation2 + $0x178] sm:$0xff]
        %v295 = vld [vmem:[#allocation2 + $0x180] sm:$0xff]
        %v296 = vld [vmem:[#allocation2 + $0x188] sm:$0xff]
        %v297 = vld [vmem:[#allocation2 + $0x190] sm:$0xff]
        %v298 = vld [vmem:[#allocation2 + $0x198] sm:$0xff]
        %v299 = vld [vmem:[#allocation2 + $0x1a0] sm:$0xff]
        %v300 = vld [vmem:[#allocation2 + $0x1a8] sm:$0xff]
        %v301 = vld [vmem:[#allocation2 + $0x1b0] sm:$0xff]
        %v302 = vld [vmem:[#allocation2 + $0x1b8] sm:$0xff]
        %v303 = vld [vmem:[#allocation2 + $0x1c0] sm:$0xff]
        %v304 = vld [vmem:[#allocation2 + $0x1c8] sm:$0xff]
        %v305 = vld [vmem:[#allocation2 + $0x1d0] sm:$0xff]
        %v306 = vld [vmem:[#allocation2 + $0x1d8] sm:$0xff]
        %v307 = vld [vmem:[#allocation2 + $0x1e0] sm:$0xff]
        %v308 = vld [vmem:[#allocation2 + $0x1e8] sm:$0xff]
        %v309 = vld [vmem:[#allocation2 + $0x1f0] sm:$0xff]
        %v310 = vld [vmem:[#allocation2 + $0x1f8] sm:$0xff]
        %v311 = vld [vmem:[#allocation2 + $0x200] sm:$0xff]
        %v312 = vld [vmem:[#allocation2 + $0x208] sm:$0xff]
        %v313 = vld [vmem:[#allocation2 + $0x210] sm:$0xff]
        %v314 = vld [vmem:[#allocation2 + $0x218] sm:$0xff]
        %v315 = vld [vmem:[#allocation2 + $0x220] sm:$0xff]
        %v316 = vld [vmem:[#allocation2 + $0x228] sm:$0xff]
        %v317 = vld [vmem:[#allocation2 + $0x230] sm:$0xff]
        %v318 = vld [vmem:[#allocation2 + $0x238] sm:$0xff]
        %v319 = vld [vmem:[#allocation2 + $0x240] sm:$0xff]
        %v320 = vld [vmem:[#allocation2 + $0x248] sm:$0xff]
        %v321 = vld [vmem:[#allocation2 + $0x250] sm:$0xff]
        %v322 = vld [vmem:[#allocation2 + $0x258] sm:$0xff]
        %v323 = vld [vmem:[#allocation2 + $0x260] sm:$0xff]
        %v324 = vld [vmem:[#allocation2 + $0x268] sm:$0xff]
        %v325 = vld [vmem:[#allocation2 + $0x270] sm:$0xff]
        %v326 = vld [vmem:[#allocation2 + $0x278] sm:$0xff]
        %v327 = vld [vmem:[#allocation2 + $0x280] sm:$0xff]
        %v328 = vld [vmem:[#allocation2 + $0x288] sm:$0xff]
        %v329 = vld [vmem:[#allocation2 + $0x290] sm:$0xff]
        %v330 = vld [vmem:[#allocation2 + $0x298] sm:$0xff]
        %v331 = vld [vmem:[#allocation2 + $0x2a0] sm:$0xff]
        %v332 = vld [vmem:[#allocation2 + $0x2a8] sm:$0xff]
        %v333 = vld [vmem:[#allocation2 + $0x2b0] sm:$0xff]
        %v334 = vld [vmem:[#allocation2 + $0x2b8] sm:$0xff]
        %v335 = vld [vmem:[#allocation2 + $0x2c0] sm:$0xff]
        %v336 = vld [vmem:[#allocation2 + $0x2c8] sm:$0xff]
        %v337 = vld [vmem:[#allocation2 + $0x2d0] sm:$0xff]
        %v338 = vld [vmem:[#allocation2 + $0x2d8] sm:$0xff]
        %v339 = vld [vmem:[#allocation2 + $0x2e0] sm:$0xff]
        %v340 = vld [vmem:[#allocation2 + $0x2e8] sm:$0xff]
        %v341 = vld [vmem:[#allocation2 + $0x2f0] sm:$0xff]
        %v342 = vld [vmem:[#allocation2 + $0x2f8] sm:$0xff]
        %v343 = vld [vmem:[#allocation2 + $0x300] sm:$0xff]
        %v344 = vld [vmem:[#allocation2 + $0x308] sm:$0xff]
        %v345 = vld [vmem:[#allocation2 + $0x310] sm:$0xff]
        %v346 = vld [vmem:[#allocation2 + $0x318] sm:$0xff]
        %v347 = vld [vmem:[#allocation2 + $0x320] sm:$0xff]
        %v348 = vld [vmem:[#allocation2 + $0x328] sm:$0xff]
        %v349 = vld [vmem:[#allocation2 + $0x330] sm:$0xff]
        %v350 = vld [vmem:[#allocation2 + $0x338] sm:$0xff]
        %v351 = vld [vmem:[#allocation2 + $0x340] sm:$0xff]
        %v352 = vld [vmem:[#allocation2 + $0x348] sm:$0xff]
        %v353 = vld [vmem:[#allocation2 + $0x350] sm:$0xff]
        %v354 = vld [vmem:[#allocation2 + $0x358] sm:$0xff]
        %v355 = vld [vmem:[#allocation2 + $0x360] sm:$0xff]
        %v356 = vld [vmem:[#allocation2 + $0x368] sm:$0xff]
        %v357 = vld [vmem:[#allocation2 + $0x370] sm:$0xff]
        %v358 = vld [vmem:[#allocation2 + $0x378] sm:$0xff]
        %v359 = vld [vmem:[#allocation2 + $0x380] sm:$0xff]
        %v360 = vld [vmem:[#allocation2 + $0x388] sm:$0xff]
        %v361 = vld [vmem:[#allocation2 + $0x390] sm:$0xff]
        %v362 = vld [vmem:[#allocation2 + $0x398] sm:$0xff]
        %v363 = vld [vmem:[#allocation2 + $0x3a0] sm:$0xff]
        %v364 = vld [vmem:[#allocation2 + $0x3a8] sm:$0xff]
        %v365 = vld [vmem:[#allocation2 + $0x3b0] sm:$0xff]
        %v366 = vld [vmem:[#allocation2 + $0x3b8] sm:$0xff]
        %v367 = vld [vmem:[#allocation2 + $0x3c0] sm:$0xff]
        %v368 = vld [vmem:[#allocation2 + $0x3c8] sm:$0xff]
        %v369 = vld [vmem:[#allocation2 + $0x3d0] sm:$0xff]
        %v370 = vld [vmem:[#allocation2 + $0x3d8] sm:$0xff]
        %v371 = vld [vmem:[#allocation2 + $0x3e0] sm:$0xff]
        %v372 = vld [vmem:[#allocation2 + $0x3e8] sm:$0xff]
        %v373 = vld [vmem:[#allocation2 + $0x3f0] sm:$0xff]
        %v374 = vld [vmem:[#allocation2 + $0x3f8] sm:$0xff]
        %v375 = vld [vmem:[%s2] sm:$0xff]
        %376 = vmatpush.msra.mxu0 %v262
        %377 = vmatpush.msra.mxu0 %v261
        %378 = vmatpush.msra.mxu0 %v260
        %379 = vmatpush.msra.mxu0 %v259
        %380 = vmatpush.msra.mxu0 %v258
        %381 = vmatpush.msra.mxu0 %v257
        %382 = vmatpush.msra.mxu0 %v256
        %383 = vmatpush.msra.mxu0 %v255
        %384 = vmatpush.msra.mxu0 %v254
        %385 = vmatpush.msra.mxu0 %v253
        %386 = vmatpush.msra.mxu0 %v252
        %387 = vmatpush.msra.mxu0 %v251
        %388 = vmatpush.msra.mxu0 %v250
        %389 = vmatpush.msra.mxu0 %v249
        %390 = vmatpush.msra.mxu0 %v248
        %391 = vmatpush.msra.mxu0 %v247
        %392 = vmatmul.f32.gmra.mxu0 %v239
        %v393 = vpop.f32.mrf.mxu0
        %v394 = vadd.f32 %v375, %v393
        %395 = vdwg.mxu0
        %396 = vmatpush.msra.mxu0 %v278
        %397 = vmatpush.msra.mxu0 %v277
        %398 = vmatpush.msra.mxu0 %v276
        %399 = vmatpush.msra.mxu0 %v275
        %400 = vmatpush.msra.mxu0 %v274
        %401 = vmatpush.msra.mxu0 %v273
        %402 = vmatpush.msra.mxu0 %v272
        %403 = vmatpush.msra.mxu0 %v271
        %404 = vmatpush.msra.mxu0 %v270
        %405 = vmatpush.msra.mxu0 %v269
        %406 = vmatpush.msra.mxu0 %v268
        %407 = vmatpush.msra.mxu0 %v267
        %408 = vmatpush.msra.mxu0 %v266
        %409 = vmatpush.msra.mxu0 %v265
        %410 = vmatpush.msra.mxu0 %v264
        %411 = vmatpush.msra.mxu0 %v263
        %412 = vmatmul.f32.gmra.mxu0 %v240
        %v413 = vpop.f32.mrf.mxu0
        %v414 = vadd.f32 %v394, %v413
        %415 = vdwg.mxu0
        %416 = vmatpush.msra.mxu0 %v294
        %417 = vmatpush.msra.mxu0 %v293
        %418 = vmatpush.msra.mxu0 %v292
        %419 = vmatpush.msra.mxu0 %v291
        %420 = vmatpush.msra.mxu0 %v290
        %421 = vmatpush.msra.mxu0 %v289
        %422 = vmatpush.msra.mxu0 %v288
        %423 = vmatpush.msra.mxu0 %v287
        %424 = vmatpush.msra.mxu0 %v286
        %425 = vmatpush.msra.mxu0 %v285
        %426 = vmatpush.msra.mxu0 %v284
        %427 = vmatpush.msra.mxu0 %v283
        %428 = vmatpush.msra.mxu0 %v282
        %429 = vmatpush.msra.mxu0 %v281
        %430 = vmatpush.msra.mxu0 %v280
        %431 = vmatpush.msra.mxu0 %v279
        %432 = vmatmul.f32.gmra.mxu0 %v241
        %v433 = vpop.f32.mrf.mxu0
        %v434 = vadd.f32 %v414, %v433
        %435 = vdwg.mxu0
        %436 = vmatpush.msra.mxu0 %v310
        %437 = vmatpush.msra.mxu0 %v309
        %438 = vmatpush.msra.mxu0 %v308
        %439 = vmatpush.msra.mxu0 %v307
        %440 = vmatpush.msra.mxu0 %v306
        %441 = vmatpush.msra.mxu0 %v305
        %442 = vmatpush.msra.mxu0 %v304
        %443 = vmatpush.msra.mxu0 %v303
        %444 = vmatpush.msra.mxu0 %v302
        %445 = vmatpush.msra.mxu0 %v301
        %446 = vmatpush.msra.mxu0 %v300
        %447 = vmatpush.msra.mxu0 %v299
        %448 = vmatpush.msra.mxu0 %v298
        %449 = vmatpush.msra.mxu0 %v297
        %450 = vmatpush.msra.mxu0 %v296
        %451 = vmatpush.msra.mxu0 %v295
        %452 = vmatmul.f32.gmra.mxu0 %v242
        %v453 = vpop.f32.mrf.mxu0
        %v454 = vadd.f32 %v434, %v453
        %455 = vdwg.mxu0
        %456 = vmatpush.msra.mxu0 %v326
        %457 = vmatpush.msra.mxu0 %v325
        %458 = vmatpush.msra.mxu0 %v324
        %459 = vmatpush.msra.mxu0 %v323
        %460 = vmatpush.msra.mxu0 %v322
        %461 = vmatpush.msra.mxu0 %v321
        %462 = vmatpush.msra.mxu0 %v320
        %463 = vmatpush.msra.mxu0 %v319
        %464 = vmatpush.msra.mxu0 %v318
        %465 = vmatpush.msra.mxu0 %v317
        %466 = vmatpush.msra.mxu0 %v316
        %467 = vmatpush.msra.mxu0 %v315
        %468 = vmatpush.msra.mxu0 %v314
        %469 = vmatpush.msra.mxu0 %v313
        %470 = vmatpush.msra.mxu0 %v312
        %471 = vmatpush.msra.mxu0 %v311
        %472 = vmatmul.f32.gmra.mxu0 %v243
        %v473 = vpop.f32.mrf.mxu0
        %v474 = vadd.f32 %v454, %v473
        %475 = vdwg.mxu0
        %476 = vmatpush.msra.mxu0 %v342
        %477 = vmatpush.msra.mxu0 %v341
        %478 = vmatpush.msra.mxu0 %v340
        %479 = vmatpush.msra.mxu0 %v339
        %480 = vmatpush.msra.mxu0 %v338
        %481 = vmatpush.msra.mxu0 %v337
        %482 = vmatpush.msra.mxu0 %v336
        %483 = vmatpush.msra.mxu0 %v335
        %484 = vmatpush.msra.mxu0 %v334
        %485 = vmatpush.msra.mxu0 %v333
        %486 = vmatpush.msra.mxu0 %v332
        %487 = vmatpush.msra.mxu0 %v331
        %488 = vmatpush.msra.mxu0 %v330
        %489 = vmatpush.msra.mxu0 %v329
        %490 = vmatpush.msra.mxu0 %v328
        %491 = vmatpush.msra.mxu0 %v327
        %492 = vmatmul.f32.gmra.mxu0 %v244
        %v493 = vpop.f32.mrf.mxu0
        %v494 = vadd.f32 %v474, %v493
        %495 = vdwg.mxu0
        %496 = vmatpush.msra.mxu0 %v358
        %497 = vmatpush.msra.mxu0 %v357
        %498 = vmatpush.msra.mxu0 %v356
        %499 = vmatpush.msra.mxu0 %v355
        %500 = vmatpush.msra.mxu0 %v354
        %501 = vmatpush.msra.mxu0 %v353
        %502 = vmatpush.msra.mxu0 %v352
        %503 = vmatpush.msra.mxu0 %v351
        %504 = vmatpush.msra.mxu0 %v350
        %505 = vmatpush.msra.mxu0 %v349
        %506 = vmatpush.msra.mxu0 %v348
        %507 = vmatpush.msra.mxu0 %v347
        %508 = vmatpush.msra.mxu0 %v346
        %509 = vmatpush.msra.mxu0 %v345
        %510 = vmatpush.msra.mxu0 %v344
        %511 = vmatpush.msra.mxu0 %v343
        %512 = vmatmul.f32.gmra.mxu0 %v245
        %v513 = vpop.f32.mrf.mxu0
        %v514 = vadd.f32 %v494, %v513
        %515 = vdwg.mxu0
        %516 = vmatpush.msra.mxu0 %v374
        %517 = vmatpush.msra.mxu0 %v373
        %518 = vmatpush.msra.mxu0 %v372
        %519 = vmatpush.msra.mxu0 %v371
        %520 = vmatpush.msra.mxu0 %v370
        %521 = vmatpush.msra.mxu0 %v369
        %522 = vmatpush.msra.mxu0 %v368
        %523 = vmatpush.msra.mxu0 %v367
        %524 = vmatpush.msra.mxu0 %v366
        %525 = vmatpush.msra.mxu0 %v365
        %526 = vmatpush.msra.mxu0 %v364
        %527 = vmatpush.msra.mxu0 %v363
        %528 = vmatpush.msra.mxu0 %v362
        %529 = vmatpush.msra.mxu0 %v361
        %530 = vmatpush.msra.mxu0 %v360
        %531 = vmatpush.msra.mxu0 %v359
        %532 = vmatmul.f32.gmra.mxu0 %v246
        %v533 = vpop.f32.mrf.mxu0
        %v534 = vadd.f32 %v514, %v533
        %535 = vdwg.mxu0
        %536 = vadd.xlane.f32.xlu0 %v534
        %v537 = vpop.xlane.xlu0 %536
        %v538 = vmul.f32 %v537, 0.0078125
        %v539 = vsub.f32 %v534, %v538
        %v540 = vmul.f32 %v539, %v539
        %541 = vadd.xlane.f32.xlu0 %v540
        %v542 = vpop.xlane.xlu0 %541
        %v543 = vmul.f32 %v542, 0.0078125
        %v544 = vadd.f32 %v543, 1e-12
        %v545 = vrsqrt.pop %v544
        %v546 = vmul.f32 %v545, %v544
        %v547 = vmul.f32 %v546, %v545
        %v548 = vmul.f32 0.5, %v547
        %v549 = vsub.f32 1.5, %v548
        %v550 = vmul.f32 %v545, %v549
        %vm551 = vweird.f32 %v544
        %vm552 = vweird.f32 %v545
        %vm553 = vmor %vm551, %vm552
        %v554 = vsel %vm553, %v545, %v550
        %v555 = vmul.f32 %v539, %v554
        %v556 = vld [vmem:[%s3] sm:$0x1]
        %v557 = vperm.slane %v556, 0
        %v558 = vmul.f32 %v555, %v557
        %v559 = vld [vmem:[%s3 + $0x1] sm:$0x1]
        %v560 = vperm.slane %v559, 0
        %v561 = vadd.f32 %v558, %v560
        %562 = vst [vmem:[%s205] sm:$0xff] %v561
        %s563 = sand.u32 %s116, 1
        %s564 = scalar_lea.sflag [#allocation4], %s563
        %s565 = sand.u32 %s116, 1
        %s566 = smul.addr %s565, 8
        %s567 = scalar_lea.vmem [#allocation5], %s566
        // Predicated region
        $region41: #{tpu_custom_call.1} parent=35 // pred_check
          %p568 = pneg %p126
        $region42: #{tpu_custom_call.1} parent=35 // pred_check_branch
          %570 = sbr.rel (%p568) target = $region44
        $region43: #{tpu_custom_call.1} parent=35 // pred_region
          %572 = vsyncadd %s564, 0
          %s573 = smul.addr %s19, 8
          %s574 = scalar_lea.hbm %s4, %s573
          %s576 = sshll.u32 %s567, 4
          %s577 = int_to_ptr.vmem [resolvable:$true] %s576
          %s578 = sshll.u32 %s574, 4
          %s579 = int_to_ptr.hbm [resolvable:$true] %s578
          %581 = dma.vmem_to_hbm [thread:$0]  %s577, 128, %s579, %s564
        $region44: #{tpu_custom_call.1} parent=35 // pred_fallthru
          _
      $region36: #{tpu_custom_call.1} parent=5 // pred_fallthru
        _
      %p582 = scmp.le.s32.totalorder 2, %s14
      // Predicated region
      $region45: #{tpu_custom_call.1} parent=5 // pred_check
        %p583 = pneg %p582
      $region46: #{tpu_custom_call.1} parent=5 // pred_check_branch
        %585 = sbr.rel (%p583) target = $region48
      $region47: #{tpu_custom_call.1} parent=5 // pred_region
        %s586 = ssub.s32 %s14, 2
        // Predicated region
        $region49: #{tpu_custom_call.1} parent=47 // pred_check
          %p587 = pneg %p132
        $region50: #{tpu_custom_call.1} parent=47 // pred_check_branch
          %589 = sbr.rel (%p587) target = $region52
        $region51: #{tpu_custom_call.1} parent=47 // pred_region
          %s590 = sand.u32 %s117, 1
          %s591 = scalar_lea.sflag [#allocation4], %s590
          %s592 = sand.u32 %s117, 1
          %s593 = smul.addr %s592, 8
          %s594 = scalar_lea.vmem [#allocation5], %s593
          %596 = dma.done %s591, 128
        $region52: #{tpu_custom_call.1} parent=47 // pred_fallthru
          _
      $region48: #{tpu_custom_call.1} parent=5 // pred_fallthru
        _
    $region6: #{tpu_custom_call.1} parent=1 // loop_footer
      %s18 = sadd.s32 1, %s14
    $region7: #{tpu_custom_call.1} parent=1 // loop_footer_branch
      %13 = sbr.rel target = $region3
    $region8: #{tpu_custom_call.1} parent=1 // loop_exit
      _
    %597 = vsyncpa [#allocation3], 1
    %s598 = scalar_lea.sflag [#allocation3], 1
    %599 = vsyncpa %s598, 1
    %600 = vsyncpa [#allocation4], 1
    %s601 = scalar_lea.sflag [#allocation4], 1
    %602 = vsyncpa %s601, 1

</llo_original>
